<compile_context>
chip_gen: v5e
topology: v5e:2x2
jax: 0.10.0
libtpu: 0.0.40
codegen_flags: <defaults>
</compile_context>

<pallas_src>
import functools

import jax
import jax.numpy as jnp
from jax.experimental import pallas as pl
from jax.experimental.pallas import tpu as pltpu

T_EMB_SIZE = 32
BATCH = 8

MONTH_VOCAB = 31
WEEK_VOCAB = 7
HOUR_VOCAB = 24
WEEK_OFF = MONTH_VOCAB                 # 31
HOUR_OFF = MONTH_VOCAB + WEEK_VOCAB    # 38
STACK_VOCAB = 64                       # 62 real rows padded to a multiple of 8


def temporal_emb_kernel(x_ref, w_ref, out_ref):
    f32 = jnp.float32
    tb = out_ref.shape[0]
    e = out_ref.shape[1]

    x = x_ref[...]                                           # [tb, 4] f32

    # In-kernel cast + offset into the stacked (month | week | hour) table.
    im = x[:, 0:1].astype(jnp.int32)                         # [tb, 1]
    iw = x[:, 1:2].astype(jnp.int32) + WEEK_OFF              # [tb, 1]
    ih = x[:, 2:3].astype(jnp.int32) + HOUR_OFF              # [tb, 1]
    interval = x[:, 3:4]                                     # [tb, 1]

    # Unpack the single packed weight array (all slice bounds static, 8-aligned).
    w_merged = w_ref[0:STACK_VOCAB + e, :]                   # [64+E, E] folded | W_fc4
    vecs = w_ref[STACK_VOCAB + e:STACK_VOCAB + e + 8, :]     # [8, E] packed row vectors
    w_int = vecs[0:1, :]                                     # [1, E]
    b_int = vecs[1:2, :]                                     # [1, E]
    b_fc = vecs[2:3, :]                                      # [1, E]

    # Fused one-hot over the stacked table: replaces three gathers + concat.
    iota = jax.lax.broadcasted_iota(jnp.int32, (tb, STACK_VOCAB), 1)
    onehot = ((iota == im) | (iota == iw) | (iota == ih)).astype(f32)   # [tb, 64]

    # interval branch: Linear(1, E) + ReLU is an outer product -> pure VPU.
    intervals = jnp.maximum(interval * w_int + b_int, 0.0)              # [tb, E]

    # Single K = 64+E MXU matmul for the whole fc layer.
    act = jnp.concatenate([onehot, intervals], axis=1)                  # [tb, 64+E]
    time = jnp.dot(act, w_merged, preferred_element_type=f32) + b_fc    # [tb, E]
    out_ref[...] = jnp.maximum(time, 0.0)


def fold_params(params):
    """Host-side, once: fold embedding tables into W_fc and pack all weights."""
    e = params["month_emb"].shape[1]
    w_fc = params["w_fc"]                                    # [4E, E]
    folded = jnp.concatenate(
        [params["month_emb"] @ w_fc[0 * e:1 * e],            # [31, E]
         params["week_emb"] @ w_fc[1 * e:2 * e],             # [7,  E]
         params["hour_emb"] @ w_fc[2 * e:3 * e],             # [24, E]
         jnp.zeros((STACK_VOCAB - MONTH_VOCAB - WEEK_VOCAB - HOUR_VOCAB, e),
                   jnp.float32)],
        axis=0)                                              # [64, E]
    vecs = jnp.concatenate(
        [params["w_int"], params["b_int"], params["b_fc"],
         jnp.zeros((5, e), jnp.float32)], axis=0)            # [8, E]
    return jnp.concatenate([folded, w_fc[3 * e:4 * e], vecs], axis=0)  # [64+E+8, E]


def _round_up(n, m):
    return (n + m - 1) // m * m


@functools.partial(jax.jit, static_argnames=("tile_b",))
def temporal_emb(x, packed_w, *, tile_b=1024):
    """x: [B, 4] f32 columns = (day_of_month, day_of_week, hour_of_day, interval)."""
    b = x.shape[0]
    e = packed_w.shape[1]

    tb = min(tile_b, _round_up(b, 8))
    bp = _round_up(b, tb)
    if bp != b:
        x = jnp.pad(x, ((0, bp - b), (0, 0)))

    vmem = pltpu.MemorySpace.VMEM
    cost = pl.CostEstimate(
        flops=2 * bp * (STACK_VOCAB + e) * e,
        transcendentals=0,
        bytes_accessed=4 * bp * 4 + 4 * bp * e + 4 * packed_w.shape[0] * e,
    )
    out = pl.pallas_call(
        temporal_emb_kernel,
        out_shape=jax.ShapeDtypeStruct((bp, e), jnp.float32),
        grid=(bp // tb,),
        in_specs=[
            pl.BlockSpec((tb, 4), lambda i: (i, 0), memory_space=vmem),
            # grid-invariant weight block: fetched once, kept resident
            pl.BlockSpec(packed_w.shape, lambda i: (0, 0), memory_space=vmem),
        ],
        out_specs=pl.BlockSpec((tb, e), lambda i: (i, 0), memory_space=vmem),
        compiler_params=pltpu.CompilerParams(
            dimension_semantics=("parallel",)),
        cost_estimate=cost,
    )(x, packed_w)
    return out[:b]


def init_params(key, e):
    ks = jax.random.split(key, 8)
    return {
        "month_emb": jax.random.normal(ks[0], (MONTH_VOCAB, e), jnp.float32),
        "week_emb": jax.random.normal(ks[1], (WEEK_VOCAB, e), jnp.float32),
        "hour_emb": jax.random.normal(ks[2], (HOUR_VOCAB, e), jnp.float32),
        # Linear(1, E): torch weight [E, 1] -> stored transposed [1, E]
        "w_int": jax.random.normal(ks[3], (1, e), jnp.float32) * 0.5,
        "b_int": jax.random.normal(ks[4], (1, e), jnp.float32) * 0.1,
        # Linear(4E, E): torch weight [E, 4E] -> stored transposed [4E, E]
        "w_fc": jax.random.normal(ks[5], (4 * e, e), jnp.float32) * (1.0 / (4 * e) ** 0.5),
        "b_fc": jax.random.normal(ks[6], (1, e), jnp.float32) * 0.1,
    }


def reference(x, p):
    # pure-JAX mirror of the PyTorch forward (unfolded).
    im = x[:, 0].astype(jnp.int32)
    iw = x[:, 1].astype(jnp.int32)
    ih = x[:, 2].astype(jnp.int32)
    dom = p["month_emb"][im]
    dow = p["week_emb"][iw]
    hod = p["hour_emb"][ih]
    inter = jnp.maximum(x[:, 3:4] @ p["w_int"] + p["b_int"], 0.0)
    cat = jnp.concatenate([dom, dow, hod, inter], axis=1)
    return jnp.maximum(cat @ p["w_fc"] + p["b_fc"], 0.0)


if __name__ == "__main__":
    key = jax.random.PRNGKey(0)
    k_p, k_m, k_w, k_h, k_i = jax.random.split(key, 5)

    params = init_params(k_p, T_EMB_SIZE)
    packed_w = fold_params(params)            # done once, outside the hot path

    day_of_month = jax.random.randint(k_m, (BATCH,), 0, MONTH_VOCAB).astype(jnp.float32)
    day_of_week = jax.random.randint(k_w, (BATCH,), 0, WEEK_VOCAB).astype(jnp.float32)
    hour_of_day = jax.random.randint(k_h, (BATCH,), 0, HOUR_VOCAB).astype(jnp.float32)
    interval = jax.random.uniform(k_i, (BATCH,), jnp.float32, 0.0, 10.0)
    x = jnp.stack([day_of_month, day_of_week, hour_of_day, interval], axis=1)  # [B, 4]

    out = temporal_emb(x, packed_w)
    out = jax.block_until_ready(out)

    ref = reference(x, params)
    assert out.shape == (BATCH, T_EMB_SIZE)
    assert jnp.allclose(out, ref, atol=1e-3, rtol=1e-3), float(jnp.max(jnp.abs(out - ref)))

    print("KERNEL_OK")
</pallas_src>

<mosaic_0001>
module attributes {stable_mosaic.version = 11 : i64} {
  func.func @temporal_emb_kernel(%arg0: i32, %arg1: memref<8x4xf32, #tpu.memory_space<vmem>>, %arg2: memref<104x32xf32, #tpu.memory_space<vmem>>, %arg3: memref<8x32xf32, #tpu.memory_space<vmem>>) attributes {dimension_semantics = [#tpu.dimension_semantics<parallel>], iteration_bounds = array<i64: 1>, scalar_prefetch = 0 : i64, scratch_operands = 0 : i64, tpu.core_type = #tpu.core_type<tc>, window_params = [{transform_indices = @transform_0, window_bounds = array<i64: 8, 4>}, {pipeline_mode = #tpu.pipeline_mode<synchronous>, transform_indices = @transform_1, window_bounds = array<i64: 104, 32>}, {transform_indices = @transform_2, window_bounds = array<i64: 8, 32>}]} {
    %c0 = arith.constant 0 : index
    %c0_0 = arith.constant 0 : index
    %0 = vector.load %arg1[%c0, %c0_0] : memref<8x4xf32, #tpu.memory_space<vmem>>, vector<8x4xf32>
    %1 = vector.extract_strided_slice %0 {offsets = [0, 0], sizes = [8, 1], strides = [1, 1]} : vector<8x4xf32> to vector<8x1xf32>
    %2 = arith.fptosi %1 : vector<8x1xf32> to vector<8x1xi32>
    %3 = vector.extract_strided_slice %0 {offsets = [0, 1], sizes = [8, 1], strides = [1, 1]} : vector<8x4xf32> to vector<8x1xf32>
    %4 = arith.fptosi %3 : vector<8x1xf32> to vector<8x1xi32>
    %c31_i32 = arith.constant 31 : i32
    %5 = vector.broadcast %c31_i32 : i32 to vector<8x1xi32>
    %6 = arith.addi %4, %5 : vector<8x1xi32>
    %7 = vector.extract_strided_slice %0 {offsets = [0, 2], sizes = [8, 1], strides = [1, 1]} : vector<8x4xf32> to vector<8x1xf32>
    %8 = arith.fptosi %7 : vector<8x1xf32> to vector<8x1xi32>
    %c38_i32 = arith.constant 38 : i32
    %9 = vector.broadcast %c38_i32 : i32 to vector<8x1xi32>
    %10 = arith.addi %8, %9 : vector<8x1xi32>
    %11 = vector.extract_strided_slice %0 {offsets = [0, 3], sizes = [8, 1], strides = [1, 1]} : vector<8x4xf32> to vector<8x1xf32>
    %c0_1 = arith.constant 0 : index
    %c0_2 = arith.constant 0 : index
    %12 = vector.load %arg2[%c0_1, %c0_2] : memref<104x32xf32, #tpu.memory_space<vmem>>, vector<96x32xf32>
    %c96 = arith.constant 96 : index
    %c0_3 = arith.constant 0 : index
    %13 = vector.load %arg2[%c96, %c0_3] : memref<104x32xf32, #tpu.memory_space<vmem>>, vector<8x32xf32>
    %14 = vector.extract_strided_slice %13 {offsets = [0, 0], sizes = [1, 32], strides = [1, 1]} : vector<8x32xf32> to vector<1x32xf32>
    %15 = vector.extract_strided_slice %13 {offsets = [1, 0], sizes = [1, 32], strides = [1, 1]} : vector<8x32xf32> to vector<1x32xf32>
    %16 = vector.extract_strided_slice %13 {offsets = [2, 0], sizes = [1, 32], strides = [1, 1]} : vector<8x32xf32> to vector<1x32xf32>
    %17 = tpu.iota {dimensions = array<i32: 1>} : vector<8x64xi32>
    %18 = vector.broadcast %2 : vector<8x1xi32> to vector<8x64xi32>
    %19 = arith.cmpi eq, %17, %18 : vector<8x64xi32>
    %20 = vector.broadcast %6 : vector<8x1xi32> to vector<8x64xi32>
    %21 = arith.cmpi eq, %17, %20 : vector<8x64xi32>
    %22 = arith.ori %19, %21 : vector<8x64xi1>
    %23 = vector.broadcast %10 : vector<8x1xi32> to vector<8x64xi32>
    %24 = arith.cmpi eq, %17, %23 : vector<8x64xi32>
    %25 = arith.ori %22, %24 : vector<8x64xi1>
    %26 = arith.extui %25 : vector<8x64xi1> to vector<8x64xi32>
    %27 = arith.sitofp %26 : vector<8x64xi32> to vector<8x64xf32>
    %28 = vector.broadcast %11 : vector<8x1xf32> to vector<8x32xf32>
    %29 = vector.broadcast %14 : vector<1x32xf32> to vector<8x32xf32>
    %30 = arith.mulf %28, %29 : vector<8x32xf32>
    %31 = vector.broadcast %15 : vector<1x32xf32> to vector<8x32xf32>
    %32 = arith.addf %30, %31 : vector<8x32xf32>
    %cst = arith.constant 0.000000e+00 : f32
    %33 = vector.broadcast %cst : f32 to vector<8x32xf32>
    %34 = arith.maximumf %32, %33 : vector<8x32xf32>
    %35 = tpu.concatenate %27, %34 in 1 : vector<8x64xf32>, vector<8x32xf32> -> vector<8x96xf32>
    %cst_4 = arith.constant dense<0.000000e+00> : vector<8x32xf32>
    %36 = tpu.matmul %35, %12, %cst_4 {dimension_numbers = #tpu.dot_dimension_numbers<[1], [0], [0], [1], [0, 0, 1, 1], [], []>} : vector<8x96xf32>, vector<96x32xf32>, vector<8x32xf32> -> vector<8x32xf32>
    %37 = vector.broadcast %16 : vector<1x32xf32> to vector<8x32xf32>
    %38 = arith.addf %36, %37 : vector<8x32xf32>
    %cst_5 = arith.constant 0.000000e+00 : f32
    %39 = vector.broadcast %cst_5 : f32 to vector<8x32xf32>
    %40 = arith.maximumf %38, %39 : vector<8x32xf32>
    %c0_6 = arith.constant 0 : index
    %c0_7 = arith.constant 0 : index
    %41 = vector.load %arg3[%c0_6, %c0_7] : memref<8x32xf32, #tpu.memory_space<vmem>>, vector<8x32xf32>
    tpu.vector_store %arg3[%c0_6, %c0_7], %40 {strides = array<i32>} : memref<8x32xf32, #tpu.memory_space<vmem>>, vector<8x32xf32>,
    return
  }
  func.func @transform_0(%arg0: i32) -> (i32, i32) {
    %c0_i32 = arith.constant 0 : i32
    %c0_i32_0 = arith.constant 0 : i32
    return %arg0, %c0_i32 : i32, i32
  }
  func.func @transform_1(%arg0: i32) -> (i32, i32) {
    %c0_i32 = arith.constant 0 : i32
    %c0_i32_0 = arith.constant 0 : i32
    %c0_i32_1 = arith.constant 0 : i32
    return %c0_i32, %c0_i32_0 : i32, i32
  }
  func.func @transform_2(%arg0: i32) -> (i32, i32) {
    %c0_i32 = arith.constant 0 : i32
    %c0_i32_0 = arith.constant 0 : i32
    return %arg0, %c0_i32 : i32, i32
  }
}

</mosaic_0001>

<llo_original>
// kernel: temporal_emb.1
$region0: #{temporal_emb.1}
  #allocation0 [shape = 'u32[]', space=smem, size = 0x4, offset = 0x4, fixed_abs, tag = 'smem constant byte address 0x4 - core index']
  #allocation1 [shape = 'u32[72,128]{1,0:T(1,128)}', space=vmem, size = 0x9000, scoped, tag = 'internal scratch']
  %s0 = inlined_call_operand.vmem [shape: f32[8,4], index: 0, kind: input, shape index: {}]
  %s1 = inlined_call_operand.vmem [shape: f32[104,32], index: 1, kind: input, shape index: {}]
  %s2 = inlined_call_operand.hbm [shape: f32[8,32], index: 2, kind: output, shape index: {}]
  %s3 = sld [smem:[#allocation0]]
  $region18: #{temporal_emb.1} parent=0
    _
  %s5 = ssub.s32 1, %s3
  %s6 = scalar_select 0, %s5, %s3
  $region1: #{temporal_emb.1} parent=0
    #allocation2 [shape = 'u8[4096]{0}', space=vmem, size = 0x1000, scoped, tag = 'output window, operand 0, single buffered']
    #allocation3 [shape = 's32[1]{0}', space=sflag, size = 0x4, scoped, tag = 'scoped memory for temporal_emb.1']
    %7 = vsyncpa [#allocation3], 0
    // Predicated region
    $region2: #{temporal_emb.1} parent=1 // pred_check
      _
    $region3: #{temporal_emb.1} parent=1 // pred_check_branch
      %9 = sbr.rel (0) target = $region5
    $region4: #{temporal_emb.1} parent=1 // pred_region
      _
    $region5: #{temporal_emb.1} parent=1 // pred_fallthru
      _
    // Predicated region
    $region6: #{temporal_emb.1} parent=1 // pred_check
      _
    $region7: #{temporal_emb.1} parent=1 // pred_check_branch
      %11 = sbr.rel (0) target = $region9
    $region8: #{temporal_emb.1} parent=1 // pred_region
      _
    $region9: #{temporal_emb.1} parent=1 // pred_fallthru
      _
    %v12 = vld [vmem:[%s0] sm:$0xff]
    %v13 = vcvt.f32.s32.to.zero.pseudo %v12
    %v14 = vadd.s32 %v13, 31
    %v15 = vadd.s32 %v13, 38
    %v16 = vld [vmem:[%s1] sm:$0xff]
    %v17 = vld [vmem:[%s1 + $0x8] sm:$0xff]
    %v18 = vld [vmem:[%s1 + $0x10] sm:$0xff]
    %v19 = vld [vmem:[%s1 + $0x18] sm:$0xff]
    %v20 = vld [vmem:[%s1 + $0x20] sm:$0xff]
    %v21 = vld [vmem:[%s1 + $0x28] sm:$0xff]
    %v22 = vld [vmem:[%s1 + $0x30] sm:$0xff]
    %v23 = vld [vmem:[%s1 + $0x38] sm:$0xff]
    %v24 = vld [vmem:[%s1 + $0x40] sm:$0xff]
    %v25 = vld [vmem:[%s1 + $0x48] sm:$0xff]
    %v26 = vld [vmem:[%s1 + $0x50] sm:$0xff]
    %v27 = vld [vmem:[%s1 + $0x58] sm:$0xff]
    %v28 = vld [vmem:[%s1 + $0x60] sm:$0xff]
    %v29 = vlaneseq
    %v30 = vand.u32 %v29, 127
    %31 = vset.pattern.permute.xlu0 0
    %32 = vperm.xlu0 %31, %v13
    %v33 = vpop.permute.xlu0 %32
    %vm34 = vcmp.eq.s32.totalorder %v30, %v33
    %35 = vset.pattern.permute.xlu0 1
    %36 = vperm.xlu0 %35, %v14
    %v37 = vpop.permute.xlu0 %36
    %vm38 = vcmp.eq.s32.totalorder %v30, %v37
    %vm39 = vmor %vm34, %vm38
    %40 = vset.pattern.permute.xlu0 2
    %41 = vperm.xlu0 %40, %v15
    %v42 = vpop.permute.xlu0 %41
    %vm43 = vcmp.eq.s32.totalorder %v30, %v42
    %vm44 = vmor %vm39, %vm43
    %v45 = vsel %vm44, 1, 0
    %v46 = vcvt.s32.f32 %v45
    %48 = vset.pattern.permute.xlu0 3
    %49 = vperm.xlu0 %48, %v12
    %v50 = vpop.permute.xlu0 %49
    %v52 = vperm.slane %v28, 0
    %v53 = vmul.f32 %v50, %v52
    %v54 = vperm.slane %v28, 1
    %v55 = vadd.f32 %v53, %v54
    %v56 = vmax.f32 %v55, 0.0
    %58 = vrot.lane.b32.xlu0 %v56, 64
    %v59 = vpop.permute.xlu0 %58
    %vm61 = vcmask 523264
    %v62 = vsel %vm61, %v46, %v59
    %v63 = vperm.slane %v28, 2
    %vm64 = vcmask 785408
    %v66 = vsel %vm64, %v62, 0
    %68 = vmatpush.msra.mxu0 0.0
    %69 = vmatpush.msra.mxu0 0.0
    %70 = vmatpush.msra.mxu0 0.0
    %71 = vmatpush.msra.mxu0 0.0
    %72 = vmatpush.msra.mxu0 %v27
    %73 = vmatpush.msra.mxu0 %v26
    %74 = vmatpush.msra.mxu0 %v25
    %75 = vmatpush.msra.mxu0 %v24
    %76 = vmatpush.msra.mxu0 %v23
    %77 = vmatpush.msra.mxu0 %v22
    %78 = vmatpush.msra.mxu0 %v21
    %79 = vmatpush.msra.mxu0 %v20
    %80 = vmatpush.msra.mxu0 %v19
    %81 = vmatpush.msra.mxu0 %v18
    %82 = vmatpush.msra.mxu0 %v17
    %83 = vmatpush.msra.mxu0 %v16
    %84 = vmatmul.f32.gmra.mxu0 %v66
    %v85 = vpop.f32.mrf.mxu0
    %v86 = vadd.f32 %v63, %v85
    %87 = vdwg.mxu0
    %v88 = vmax.f32 %v86, 0.0
    %vm89 = vcmask 261120
    %90 = vst.msk [vmem:[#allocation2] sm:$0xff] %vm89, %v88
    // Predicated region
    $region10: #{temporal_emb.1} parent=1 // pred_check
      _
    $region11: #{temporal_emb.1} parent=1 // pred_check_branch
      %92 = sbr.rel (0) target = $region13
    $region12: #{temporal_emb.1} parent=1 // pred_region
      %94 = vsyncadd [#allocation3], 0
      %s96 = sshll.u32 [#allocation2], 4
      %s97 = int_to_ptr.vmem [resolvable:$true] %s96
      %s98 = sshll.u32 %s2, 4
      %s99 = int_to_ptr.hbm [resolvable:$true] %s98
      %101 = dma.vmem_to_hbm [thread:$0]  %s97, 128, %s99, [#allocation3]
    $region13: #{temporal_emb.1} parent=1 // pred_fallthru
      _
    // Predicated region
    $region14: #{temporal_emb.1} parent=1 // pred_check
      _
    $region15: #{temporal_emb.1} parent=1 // pred_check_branch
      %103 = sbr.rel (0) target = $region17
    $region16: #{temporal_emb.1} parent=1 // pred_region
      %105 = dma.done [#allocation3], 128
    $region17: #{temporal_emb.1} parent=1 // pred_fallthru
      _
    %106 = vsyncpa [#allocation3], 1

</llo_original>
